<compile_context>
chip_gen: v7x
topology: tpu7x:2x2x1
jax: 0.10.0
libtpu: 0.0.40
codegen_flags: <defaults>
</compile_context>

<pallas_src>
import functools

import jax
import jax.numpy as jnp
from jax.experimental import pallas as pl
from jax.experimental.pallas import tpu as pltpu


def _layernorm2d_kernel(x_ref, w_ref, b_ref, o_ref, *, eps: float):
    # x_ref: (1, C_tile, H*W); w_ref / b_ref: (1, C_tile, 1)
    x = x_ref[...].astype(jnp.float32)
    mean = jnp.mean(x, axis=-1, keepdims=True)
    # Two-pass biased variance (matches PyTorch GroupNorm; numerically safer
    # than the fused E[x^2] - E[x]^2 single-pass form).
    xc = x - mean
    var = jnp.mean(xc * xc, axis=-1, keepdims=True)
    inv = jax.lax.rsqrt(var + eps)  # rsqrt lands on the EUP slot: ~free
    w = w_ref[...].astype(jnp.float32)
    b = b_ref[...].astype(jnp.float32)
    o_ref[...] = (xc * inv * w + b).astype(o_ref.dtype)


def _choose_c_tile(C: int, HW: int) -> int:
    """Largest multiple-of-8 divisor of C whose f32 block stays ~<= 2 MiB."""
    target_bytes = 2 * 1024 * 1024
    bytes_per_channel = HW * 4  # compute precision is f32
    if C <= 8 or C % 8 != 0:
        # Small / odd channel counts: take the full channel axis (block dim
        # equal to the full array dim satisfies the (8, 128) tiling rule).
        return C
    best = None
    t = 8
    while t <= C:
        if C % t == 0:
            if best is None or t * bytes_per_channel <= target_bytes:
                best = t
            if t * bytes_per_channel > target_bytes:
                break
        t += 8
    return best if best is not None else C


def layernorm2d(x, weight, bias, *, eps: float = 1e-5, c_tile=None):
    """LayerNorm2d forward: GroupNorm(num_groups=C, num_channels=C, affine).

    x:      (N, C, H, W)
    weight: (C,) affine scale
    bias:   (C,) affine shift
    """
    N, C, H, W = x.shape
    HW = H * W
    x3 = x.reshape(N, C, HW)
    w3 = weight.reshape(1, C, 1)
    b3 = bias.reshape(1, C, 1)

    if c_tile is None:
        c_tile = _choose_c_tile(C, HW)
    assert C % c_tile == 0, "c_tile must divide C"

    itemsize = jnp.dtype(x.dtype).itemsize
    block_bytes_f32 = c_tile * HW * 4
    # Double-buffered in/out blocks + f32 temporaries, with headroom; cap at
    # 64 MiB so the request is valid on v7x as well as v5e/v6e.
    vmem_limit = int(min(64 * 1024 * 1024,
                         max(32 * 1024 * 1024, 10 * block_bytes_f32)))

    cost = pl.CostEstimate(
        flops=8 * N * C * HW,
        transcendentals=N * C,
        bytes_accessed=2 * N * C * HW * itemsize,
    )

    kernel = functools.partial(_layernorm2d_kernel, eps=eps)
    out3 = pl.pallas_call(
        kernel,
        out_shape=jax.ShapeDtypeStruct((N, C, HW), x.dtype),
        grid_spec=pltpu.PrefetchScalarGridSpec(
            num_scalar_prefetch=0,
            grid=(N, C // c_tile),
            in_specs=[
                pl.BlockSpec((1, c_tile, HW), lambda n, c: (n, c, 0)),
                pl.BlockSpec((1, c_tile, 1), lambda n, c: (0, c, 0)),
                pl.BlockSpec((1, c_tile, 1), lambda n, c: (0, c, 0)),
            ],
            out_specs=pl.BlockSpec((1, c_tile, HW), lambda n, c: (n, c, 0)),
        ),
        compiler_params=pltpu.CompilerParams(
            dimension_semantics=("parallel", "parallel"),
            vmem_limit_bytes=vmem_limit,
        ),
        cost_estimate=cost,
    )(x3, w3, b3)
    return out3.reshape(N, C, H, W)


def _reference(x, weight, bias, eps=1e-5):
    xf = x.astype(jnp.float32)
    mean = jnp.mean(xf, axis=(2, 3), keepdims=True)
    var = jnp.mean((xf - mean) ** 2, axis=(2, 3), keepdims=True)
    y = (xf - mean) * jax.lax.rsqrt(var + eps)
    y = y * weight.reshape(1, -1, 1, 1) + bias.reshape(1, -1, 1, 1)
    return y.astype(x.dtype)


if __name__ == "__main__":
    N, C, H, W = 2, 4, 16, 16
    key = jax.random.PRNGKey(0)
    kx, kw, kb = jax.random.split(key, 3)
    x = jax.random.normal(kx, (N, C, H, W), dtype=jnp.float32)
    # PyTorch default affine init is ones/zeros; use random values here to
    # exercise the affine path nontrivially.
    weight = 1.0 + 0.1 * jax.random.normal(kw, (C,), dtype=jnp.float32)
    bias = 0.1 * jax.random.normal(kb, (C,), dtype=jnp.float32)

    out = layernorm2d(x, weight, bias)
    out = jax.block_until_ready(out)

    ref = _reference(x, weight, bias)
    assert jnp.allclose(out, ref, atol=1e-5, rtol=1e-5), "mismatch vs reference"
    print("KERNEL_OK")
</pallas_src>

<mosaic_0001>
module attributes {stable_mosaic.version = 11 : i64} {
  func.func @_layernorm2d_kernel(%arg0: i32, %arg1: i32, %arg2: memref<1x4x256xf32, #tpu.memory_space<vmem>>, %arg3: memref<1x4x1xf32, #tpu.memory_space<vmem>>, %arg4: memref<1x4x1xf32, #tpu.memory_space<vmem>>, %arg5: memref<1x4x256xf32, #tpu.memory_space<vmem>>) attributes {dimension_semantics = [#tpu.dimension_semantics<parallel>, #tpu.dimension_semantics<parallel>], iteration_bounds = array<i64: 2, 1>, scalar_prefetch = 0 : i64, scratch_operands = 0 : i64, tpu.core_type = #tpu.core_type<tc>, window_params = [{transform_indices = @transform_0, window_bounds = array<i64: 1, 4, 256>}, {transform_indices = @transform_1, window_bounds = array<i64: 1, 4, 1>}, {transform_indices = @transform_2, window_bounds = array<i64: 1, 4, 1>}, {transform_indices = @transform_3, window_bounds = array<i64: 1, 4, 256>}]} {
    %c0 = arith.constant 0 : index
    %c0_0 = arith.constant 0 : index
    %c0_1 = arith.constant 0 : index
    %0 = vector.load %arg2[%c0, %c0_0, %c0_1] : memref<1x4x256xf32, #tpu.memory_space<vmem>>, vector<1x4x256xf32>
    %cst = arith.constant dense<0.000000e+00> : vector<1x4xf32>
    %1 = vector.multi_reduction <add>, %0, %cst [2] : vector<1x4x256xf32> to vector<1x4xf32>
    %2 = vector.shape_cast %1 : vector<1x4xf32> to vector<1x4x1xf32>
    %cst_2 = arith.constant 2.560000e+02 : f32
    %3 = vector.broadcast %cst_2 : f32 to vector<1x4x1xf32>
    %4 = arith.divf %2, %3 : vector<1x4x1xf32>
    %5 = vector.broadcast %4 : vector<1x4x1xf32> to vector<1x4x256xf32>
    %6 = arith.subf %0, %5 : vector<1x4x256xf32>
    %7 = arith.mulf %6, %6 : vector<1x4x256xf32>
    %cst_3 = arith.constant dense<0.000000e+00> : vector<1x4xf32>
    %8 = vector.multi_reduction <add>, %7, %cst_3 [2] : vector<1x4x256xf32> to vector<1x4xf32>
    %9 = vector.shape_cast %8 : vector<1x4xf32> to vector<1x4x1xf32>
    %cst_4 = arith.constant 2.560000e+02 : f32
    %10 = vector.broadcast %cst_4 : f32 to vector<1x4x1xf32>
    %11 = arith.divf %9, %10 : vector<1x4x1xf32>
    %cst_5 = arith.constant 9.99999974E-6 : f32
    %12 = vector.broadcast %cst_5 : f32 to vector<1x4x1xf32>
    %13 = arith.addf %11, %12 : vector<1x4x1xf32>
    %14 = math.rsqrt %13 : vector<1x4x1xf32>
    %c0_6 = arith.constant 0 : index
    %c0_7 = arith.constant 0 : index
    %c0_8 = arith.constant 0 : index
    %15 = vector.load %arg3[%c0_6, %c0_7, %c0_8] : memref<1x4x1xf32, #tpu.memory_space<vmem>>, vector<1x4x1xf32>
    %c0_9 = arith.constant 0 : index
    %c0_10 = arith.constant 0 : index
    %c0_11 = arith.constant 0 : index
    %16 = vector.load %arg4[%c0_9, %c0_10, %c0_11] : memref<1x4x1xf32, #tpu.memory_space<vmem>>, vector<1x4x1xf32>
    %17 = vector.broadcast %14 : vector<1x4x1xf32> to vector<1x4x256xf32>
    %18 = arith.mulf %6, %17 : vector<1x4x256xf32>
    %19 = vector.broadcast %15 : vector<1x4x1xf32> to vector<1x4x256xf32>
    %20 = arith.mulf %18, %19 : vector<1x4x256xf32>
    %21 = vector.broadcast %16 : vector<1x4x1xf32> to vector<1x4x256xf32>
    %22 = arith.addf %20, %21 : vector<1x4x256xf32>
    %c0_12 = arith.constant 0 : index
    %c0_13 = arith.constant 0 : index
    %c0_14 = arith.constant 0 : index
    %23 = vector.load %arg5[%c0_12, %c0_13, %c0_14] : memref<1x4x256xf32, #tpu.memory_space<vmem>>, vector<1x4x256xf32>
    tpu.vector_store %arg5[%c0_12, %c0_13, %c0_14], %22 {strides = array<i32>} : memref<1x4x256xf32, #tpu.memory_space<vmem>>, vector<1x4x256xf32>,
    return
  }
  func.func @transform_0(%arg0: i32, %arg1: i32) -> (i32, i32, i32) {
    %c0_i32 = arith.constant 0 : i32
    %c0_i32_0 = arith.constant 0 : i32
    return %arg0, %arg1, %c0_i32 : i32, i32, i32
  }
  func.func @transform_1(%arg0: i32, %arg1: i32) -> (i32, i32, i32) {
    %c0_i32 = arith.constant 0 : i32
    %c0_i32_0 = arith.constant 0 : i32
    %c0_i32_1 = arith.constant 0 : i32
    return %c0_i32, %arg1, %c0_i32_0 : i32, i32, i32
  }
  func.func @transform_2(%arg0: i32, %arg1: i32) -> (i32, i32, i32) {
    %c0_i32 = arith.constant 0 : i32
    %c0_i32_0 = arith.constant 0 : i32
    %c0_i32_1 = arith.constant 0 : i32
    return %c0_i32, %arg1, %c0_i32_0 : i32, i32, i32
  }
  func.func @transform_3(%arg0: i32, %arg1: i32) -> (i32, i32, i32) {
    %c0_i32 = arith.constant 0 : i32
    %c0_i32_0 = arith.constant 0 : i32
    return %arg0, %arg1, %c0_i32 : i32, i32, i32
  }
}

</mosaic_0001>

<llo_original>
// kernel: tpu_custom_call.1
$region0: #{tpu_custom_call.1}
  #allocation0 [shape = 'u32[]', space=smem, size = 0x4, offset = 0x4, fixed_abs, tag = 'smem constant byte address 0x4 - core index']
  #allocation1 [shape = 'u32[144,128]{1,0:T(1,128)}', space=vmem, size = 0x12000, scoped, tag = 'internal scratch']
  %s0 = inlined_call_operand.hbm [shape: f32[2,4,256], index: 0, kind: input, shape index: {}]
  %s1 = inlined_call_operand.vmem [shape: f32[1,4,1], index: 1, kind: input, shape index: {}]
  %s2 = inlined_call_operand.vmem [shape: f32[1,4,1], index: 2, kind: input, shape index: {}]
  %s3 = inlined_call_operand.hbm [shape: f32[2,4,256], index: 3, kind: output, shape index: {}]
  %s4 = sld [smem:[#allocation0]]
  $region49: #{tpu_custom_call.1} parent=0
    _
  %s6 = ssub.s32 1, %s4
  %s7 = scalar_select 0, %s6, %s4
  $region1: #{tpu_custom_call.1} parent=0
    #allocation2 [shape = 'u8[8192]{0}', space=vmem, size = 0x2000, scoped, tag = 'input window, operand 0']
    #allocation3 [shape = 's32[2]{0}', space=sflag, size = 0x8, scoped, tag = 'scoped memory for tpu_custom_call.1']
    #allocation4 [shape = 's32[2]{0}', space=sflag, size = 0x8, scoped, tag = 'scoped memory for tpu_custom_call.1']
    #allocation5 [shape = 'u8[8192]{0}', space=vmem, size = 0x2000, scoped, tag = 'output window, operand 0']
    %8 = vsyncpa [#allocation3], 0
    %s9 = scalar_lea.sflag [#allocation3], 1
    %10 = vsyncpa %s9, 0
    %11 = vsyncpa [#allocation4], 0
    %s12 = scalar_lea.sflag [#allocation4], 1
    %13 = vsyncpa %s12, 0
    loop: start=0, step=1, limit=4
    $region2: #{tpu_custom_call.1} parent=1 // loop_pre_header
      _
    $region3: #{tpu_custom_call.1} parent=1 // loop_header
      %s15 = sphi 0, %s19
      %p16 = scmp.ge.s32.totalorder %s15, 4
      %s22 = sphi 0, %s34
      %s23 = sphi 0, %s30
      %s24 = sphi 0, %s22
      %s25 = sphi 0, %s23
      %s26 = sphi 0, %s24
      %s27 = sphi 0, %s25
      %s39 = sphi 0, %s41
      %s42 = sphi 0, %s39
      %s43 = sphi 0, %s42
      %s59 = sphi 0, %s43
      %s65 = sphi 0, %s67
      %s68 = sphi 0, %s65
      %s69 = sphi 0, %s68
      %s85 = sphi 0, %s69
      %s91 = sphi 0, %s93
      %s94 = sphi 0, %s91
      %s95 = sphi 0, %s94
      %s111 = sphi 0, %s95
      %s119 = sphi 0, %s121
      %s122 = sphi 0, %s119
      %s123 = sphi 0, %s122
      %s139 = sphi 0, %s123
    $region4: #{tpu_custom_call.1} parent=1 // loop_header_branch
      %18 = sbr.rel (%p16) target = $region8
    $region5: #{tpu_custom_call.1} parent=1 // loop_body
      %s20 = ssub.s32 %s15, 1
      %s21 = ssub.s32 %s15, 2
      %s28 = sadd.s32 1, %s23
      %p29 = scmp.ge.s32.totalorder %s28, 1
      %s30 = scalar_select %p29, 0, %s28
      %s31 = sadd.s32 1, %s22
      %s32 = scalar_select %p29, %s31, %s22
      %p33 = scmp.ge.s32.totalorder %s32, 2
      %s34 = scalar_select %p33, 0, %s32
      %s35 = ssub.s32 %s22, %s34
      %s36 = ssub.s32 %s23, %s30
      %s37 = sor.u32 %s35, %s36
      %p38 = scmp.eq.s32.totalorder %s37, 0
      %s40 = sadd.s32 %s39, 1
      %s41 = scalar_select %p38, %s39, %s40
      %p44 = pneg %p38
      %p45 = scmp.eq.s32.totalorder %s15, 1
      %p46 = por %p44, %p45
      %p47 = scmp.ne.s32.totalorder %s39, %s42
      %p48 = scmp.eq.s32.totalorder %s15, 0
      %p49 = por %p47, %p48
      %p50 = scmp.ne.s32.totalorder %s39, %s42
      %p51 = scmp.eq.s32.totalorder %s20, 1
      %p52 = por %p50, %p51
      %p53 = scmp.ne.s32.totalorder %s42, %s43
      %p54 = scmp.eq.s32.totalorder %s20, 0
      %p55 = por %p53, %p54
      %p56 = scmp.ne.s32.totalorder %s42, %s43
      %p57 = scmp.eq.s32.totalorder %s21, 1
      %p58 = por %p56, %p57
      %p60 = scmp.ne.s32.totalorder %s43, %s59
      %p61 = scmp.eq.s32.totalorder %s21, 0
      %p62 = por %p60, %p61
      %s63 = ssub.s32 %s23, %s30
      %p64 = scmp.eq.s32.totalorder %s63, 0
      %s66 = sadd.s32 %s65, 1
      %s67 = scalar_select %p64, %s65, %s66
      %p70 = pneg %p64
      %p71 = scmp.eq.s32.totalorder %s15, 1
      %p72 = por %p70, %p71
      %p73 = scmp.ne.s32.totalorder %s65, %s68
      %p74 = scmp.eq.s32.totalorder %s15, 0
      %p75 = por %p73, %p74
      %p76 = scmp.ne.s32.totalorder %s65, %s68
      %p77 = scmp.eq.s32.totalorder %s20, 1
      %p78 = por %p76, %p77
      %p79 = scmp.ne.s32.totalorder %s68, %s69
      %p80 = scmp.eq.s32.totalorder %s20, 0
      %p81 = por %p79, %p80
      %p82 = scmp.ne.s32.totalorder %s68, %s69
      %p83 = scmp.eq.s32.totalorder %s21, 1
      %p84 = por %p82, %p83
      %p86 = scmp.ne.s32.totalorder %s69, %s85
      %p87 = scmp.eq.s32.totalorder %s21, 0
      %p88 = por %p86, %p87
      %s89 = ssub.s32 %s23, %s30
      %p90 = scmp.eq.s32.totalorder %s89, 0
      %s92 = sadd.s32 %s91, 1
      %s93 = scalar_select %p90, %s91, %s92
      %p96 = pneg %p90
      %p97 = scmp.eq.s32.totalorder %s15, 1
      %p98 = por %p96, %p97
      %p99 = scmp.ne.s32.totalorder %s91, %s94
      %p100 = scmp.eq.s32.totalorder %s15, 0
      %p101 = por %p99, %p100
      %p102 = scmp.ne.s32.totalorder %s91, %s94
      %p103 = scmp.eq.s32.totalorder %s20, 1
      %p104 = por %p102, %p103
      %p105 = scmp.ne.s32.totalorder %s94, %s95
      %p106 = scmp.eq.s32.totalorder %s20, 0
      %p107 = por %p105, %p106
      %p108 = scmp.ne.s32.totalorder %s94, %s95
      %p109 = scmp.eq.s32.totalorder %s21, 1
      %p110 = por %p108, %p109
      %p112 = scmp.ne.s32.totalorder %s95, %s111
      %p113 = scmp.eq.s32.totalorder %s21, 0
      %p114 = por %p112, %p113
      %s115 = ssub.s32 %s22, %s34
      %s116 = ssub.s32 %s23, %s30
      %s117 = sor.u32 %s115, %s116
      %p118 = scmp.eq.s32.totalorder %s117, 0
      %s120 = sadd.s32 %s119, 1
      %s121 = scalar_select %p118, %s119, %s120
      %p124 = pneg %p118
      %p125 = scmp.eq.s32.totalorder %s15, 1
      %p126 = por %p124, %p125
      %p127 = scmp.ne.s32.totalorder %s119, %s122
      %p128 = scmp.eq.s32.totalorder %s15, 0
      %p129 = por %p127, %p128
      %p130 = scmp.ne.s32.totalorder %s119, %s122
      %p131 = scmp.eq.s32.totalorder %s20, 1
      %p132 = por %p130, %p131
      %p133 = scmp.ne.s32.totalorder %s122, %s123
      %p134 = scmp.eq.s32.totalorder %s20, 0
      %p135 = por %p133, %p134
      %p136 = scmp.ne.s32.totalorder %s122, %s123
      %p137 = scmp.eq.s32.totalorder %s21, 1
      %p138 = por %p136, %p137
      %p140 = scmp.ne.s32.totalorder %s123, %s139
      %p141 = scmp.eq.s32.totalorder %s21, 0
      %p142 = por %p140, %p141
      %p143 = scmp.le.s32.totalorder 1, %s15
      %p144 = scmp.lt.s32.totalorder %s15, 3
      %p145 = pnand %p143, %p144
      %p146 = pneg %p145
      // Predicated region
      $region9: #{tpu_custom_call.1} parent=5 // pred_check
        _
      $region10: #{tpu_custom_call.1} parent=5 // pred_check_branch
        %148 = sbr.rel (%p145) target = $region12
      $region11: #{tpu_custom_call.1} parent=5 // pred_region
        %s149 = ssub.s32 %s15, 1
        // Predicated region
        $region13: #{tpu_custom_call.1} parent=11 // pred_check
          %p150 = pneg %p81
        $region14: #{tpu_custom_call.1} parent=11 // pred_check_branch
          %152 = sbr.rel (%p150) target = $region16
        $region15: #{tpu_custom_call.1} parent=11 // pred_region
          %p153 = scmp.lt.s32.totalorder %s25, 0
          %s154 = scalar_select %p153, %s25, 0
          %s155 = smul.addr %s154, 4
          %s156 = scalar_lea.vmem %s1, %s155
        $region16: #{tpu_custom_call.1} parent=11 // pred_fallthru
          _
        // Predicated region
        $region17: #{tpu_custom_call.1} parent=11 // pred_check
          %p157 = pneg %p107
        $region18: #{tpu_custom_call.1} parent=11 // pred_check_branch
          %159 = sbr.rel (%p157) target = $region20
        $region19: #{tpu_custom_call.1} parent=11 // pred_region
          %p160 = scmp.lt.s32.totalorder %s25, 0
          %s161 = scalar_select %p160, %s25, 0
          %s162 = smul.addr %s161, 4
          %s163 = scalar_lea.vmem %s2, %s162
        $region20: #{tpu_custom_call.1} parent=11 // pred_fallthru
          _
      $region12: #{tpu_custom_call.1} parent=5 // pred_fallthru
        _
      %p164 = scmp.lt.s32.totalorder %s15, 2
      // Predicated region
      $region21: #{tpu_custom_call.1} parent=5 // pred_check
        %p165 = pneg %p164
      $region22: #{tpu_custom_call.1} parent=5 // pred_check_branch
        %167 = sbr.rel (%p165) target = $region24
      $region23: #{tpu_custom_call.1} parent=5 // pred_region
        // Predicated region
        $region25: #{tpu_custom_call.1} parent=23 // pred_check
          %p168 = pneg %p49
        $region26: #{tpu_custom_call.1} parent=23 // pred_check_branch
          %170 = sbr.rel (%p168) target = $region28
        $region27: #{tpu_custom_call.1} parent=23 // pred_region
          %s171 = sand.u32 %s39, 1
          %s172 = scalar_lea.sflag [#allocation3], %s171
          %s173 = sand.u32 %s39, 1
          %s174 = smul.addr %s173, 8
          %s175 = scalar_lea.vmem [#allocation2], %s174
          %s177 = ssub.s32 128, 128
          %178 = vsyncadd %s172, %s177
          %s179 = smul.addr %s23, 2
          %s180 = smul.addr %s22, 2
          %s181 = sadd.s32 %s179, %s180
          %s182 = smul.addr %s181, 64
          %s183 = scalar_lea.hbm %s0, %s182
          %s185 = sshll.u32 %s175, 4
          %s186 = int_to_ptr.vmem [resolvable:$true] %s185
          %188 = dma.hbm_to_vmem [thread:$0]  %s183, 128, %s186, %s172
        $region28: #{tpu_custom_call.1} parent=23 // pred_fallthru
          _
      $region24: #{tpu_custom_call.1} parent=5 // pred_fallthru
        _
      %p189 = scmp.le.s32.totalorder 1, %s15
      %p190 = scmp.lt.s32.totalorder %s15, 3
      %p191 = pnand %p189, %p190
      %p192 = pneg %p191
      // Predicated region
      $region29: #{tpu_custom_call.1} parent=5 // pred_check
        _
      $region30: #{tpu_custom_call.1} parent=5 // pred_check_branch
        %194 = sbr.rel (%p191) target = $region32
      $region31: #{tpu_custom_call.1} parent=5 // pred_region
        %s195 = ssub.s32 %s15, 1
        %s196 = sand.u32 %s42, 1
        %s197 = scalar_lea.sflag [#allocation3], %s196
        %s198 = sand.u32 %s42, 1
        %s199 = smul.addr %s198, 8
        %s200 = scalar_lea.vmem [#allocation2], %s199
        // Predicated region
        $region33: #{tpu_custom_call.1} parent=31 // pred_check
          %p201 = pneg %p55
        $region34: #{tpu_custom_call.1} parent=31 // pred_check_branch
          %203 = sbr.rel (%p201) target = $region36
        $region35: #{tpu_custom_call.1} parent=31 // pred_region
          %204 = dma.done %s197, 128
        $region36: #{tpu_custom_call.1} parent=31 // pred_fallthru
          _
        %s205 = sand.u32 %s42, 1
        %s206 = scalar_lea.sflag [#allocation3], %s205
        %s207 = sand.u32 %s42, 1
        %s208 = smul.addr %s207, 8
        %s209 = scalar_lea.vmem [#allocation2], %s208
        %p210 = pneg %p55
        %p211 = pneg %p52
        %p212 = scmp.lt.s32.totalorder %s25, 0
        %s213 = scalar_select %p212, %s25, 0
        %s214 = smul.addr %s213, 4
        %s215 = scalar_lea.vmem %s1, %s214
        %p216 = pneg %p81
        %p217 = pneg %p78
        %p218 = scmp.lt.s32.totalorder %s25, 0
        %s219 = scalar_select %p218, %s25, 0
        %s220 = smul.addr %s219, 4
        %s221 = scalar_lea.vmem %s2, %s220
        %p222 = pneg %p107
        %p223 = pneg %p104
        %p224 = pneg %p135
        %p225 = pneg %p132
        %s226 = sand.u32 %s122, 1
        %s227 = scalar_lea.sflag [#allocation4], %s226
        %s228 = sand.u32 %s122, 1
        %s229 = smul.addr %s228, 8
        %s230 = scalar_lea.vmem [#allocation5], %s229
        %p231 = scmp.lt.s32.totalorder %s25, 0
        %s232 = scalar_select %p231, %s25, 0
        %s233 = smul.addr %s232, 4
        %s234 = scalar_lea.vmem %s1, %s233
        %p235 = scmp.lt.s32.totalorder %s25, 0
        %s236 = scalar_select %p235, %s25, 0
        %s237 = smul.addr %s236, 4
        %s238 = scalar_lea.vmem %s2, %s237
        %v239 = vld [vmem:[%s200] sm:$0xff]
        %v241 = vcombine.high %v239, %v239
        %vm243 = vcmask 1043456
        %v244 = vsel %vm243, %v239, 0.0
        %v245 = vsel %vm243, %v241, 0.0
        %v246 = vadd.f32 %v244, %v245
        %247 = vadd.xlane.f32.xlu0 %v246
        %v248 = vpop.xlane.xlu0 %247
        %v249 = vrcp.pop 256.0
        %v250 = vmul.f32 %v248, %v249
        %v253 = vunpack.c.l.s4 839922192
        %v254 = vunpack.c.0.s8 %v253
        %v255 = vlaneseq
        %v256 = vshrl.u32 %v255, 7
        %v257 = vsub.s32 %v254, %v256
        %v258 = vrot.slane %v250, %v257
        %v260 = vsub.f32 %v239, %v258
        %v261 = vmul.f32 %v260, %v260
        %v263 = vcombine.high %v261, %v261
        %v265 = vsel %vm243, %v261, 0.0
        %v266 = vsel %vm243, %v263, 0.0
        %v267 = vadd.f32 %v265, %v266
        %268 = vadd.xlane.f32.xlu0 %v267
        %v269 = vpop.xlane.xlu0 %268
        %v270 = vmul.f32 %v269, %v249
        %v271 = vadd.f32 %v270, 1e-05
        %v272 = vrsqrt.pop %v271
        %v273 = vld [vmem:[%s234] sm:$0xf]
        %v274 = vld [vmem:[%s238] sm:$0xf]
        %v277 = vunpack.c.l.s4 839922192
        %v278 = vunpack.c.0.s8 %v277
        %v279 = vlaneseq
        %v280 = vshrl.u32 %v279, 7
        %v281 = vsub.s32 %v278, %v280
        %v282 = vrot.slane %v272, %v281
        %v284 = vmul.f32 %v260, %v282
        %286 = vset.pattern.permute.xlu0 0
        %287 = vperm.xlu0 %286, %v273
        %v288 = vpop.permute.xlu0 %287
        %v290 = vunpack.c.l.s4 839922192
        %v291 = vunpack.c.0.s8 %v290
        %v292 = vlaneseq
        %v293 = vshrl.u32 %v292, 7
        %v294 = vsub.s32 %v291, %v293
        %v295 = vrot.slane %v288, %v294
        %v297 = vmul.f32 %v284, %v295
        %299 = vset.pattern.permute.xlu0 0
        %300 = vperm.xlu0 %299, %v274
        %v301 = vpop.permute.xlu0 %300
        %v303 = vunpack.c.l.s4 839922192
        %v304 = vunpack.c.0.s8 %v303
        %v305 = vlaneseq
        %v306 = vshrl.u32 %v305, 7
        %v307 = vsub.s32 %v304, %v306
        %v308 = vrot.slane %v301, %v307
        %v310 = vadd.f32 %v297, %v308
        %311 = vst [vmem:[%s230] sm:$0xff] %v310
        %s312 = sand.u32 %s122, 1
        %s313 = scalar_lea.sflag [#allocation4], %s312
        %s314 = sand.u32 %s122, 1
        %s315 = smul.addr %s314, 8
        %s316 = scalar_lea.vmem [#allocation5], %s315
        // Predicated region
        $region37: #{tpu_custom_call.1} parent=31 // pred_check
          %p317 = pneg %p132
        $region38: #{tpu_custom_call.1} parent=31 // pred_check_branch
          %319 = sbr.rel (%p317) target = $region40
        $region39: #{tpu_custom_call.1} parent=31 // pred_region
          %s321 = ssub.s32 128, 128
          %322 = vsyncadd %s313, %s321
          %s323 = smul.addr %s25, 2
          %s324 = smul.addr %s24, 2
          %s325 = sadd.s32 %s323, %s324
          %s326 = smul.addr %s325, 64
          %s327 = scalar_lea.hbm %s3, %s326
          %s329 = sshll.u32 %s316, 4
          %s330 = int_to_ptr.vmem [resolvable:$true] %s329
          %332 = dma.vmem_to_hbm [thread:$0]  %s330, 128, %s327, %s313
        $region40: #{tpu_custom_call.1} parent=31 // pred_fallthru
          _
      $region32: #{tpu_custom_call.1} parent=5 // pred_fallthru
        _
      %p333 = scmp.le.s32.totalorder 2, %s15
      // Predicated region
      $region41: #{tpu_custom_call.1} parent=5 // pred_check
        %p334 = pneg %p333
      $region42: #{tpu_custom_call.1} parent=5 // pred_check_branch
        %336 = sbr.rel (%p334) target = $region44
      $region43: #{tpu_custom_call.1} parent=5 // pred_region
        %s337 = ssub.s32 %s15, 2
        // Predicated region
        $region45: #{tpu_custom_call.1} parent=43 // pred_check
          %p338 = pneg %p138
        $region46: #{tpu_custom_call.1} parent=43 // pred_check_branch
          %340 = sbr.rel (%p338) target = $region48
        $region47: #{tpu_custom_call.1} parent=43 // pred_region
          %s341 = sand.u32 %s123, 1
          %s342 = scalar_lea.sflag [#allocation4], %s341
          %s343 = sand.u32 %s123, 1
          %s344 = smul.addr %s343, 8
          %s345 = scalar_lea.vmem [#allocation5], %s344
          %346 = dma.done %s342, 128
        $region48: #{tpu_custom_call.1} parent=43 // pred_fallthru
          _
      $region44: #{tpu_custom_call.1} parent=5 // pred_fallthru
        _
    $region6: #{tpu_custom_call.1} parent=1 // loop_footer
      %s19 = sadd.s32 1, %s15
    $region7: #{tpu_custom_call.1} parent=1 // loop_footer_branch
      %14 = sbr.rel target = $region3
    $region8: #{tpu_custom_call.1} parent=1 // loop_exit
      _
    %347 = vsyncpa [#allocation3], 1
    %s348 = scalar_lea.sflag [#allocation3], 1
    %349 = vsyncpa %s348, 1
    %350 = vsyncpa [#allocation4], 1
    %s351 = scalar_lea.sflag [#allocation4], 1
    %352 = vsyncpa %s351, 1

</llo_original>
